<compile_context>
chip_gen: v7x
topology: tpu7x:2x2x1
jax: 0.10.0
libtpu: 0.0.40
codegen_flags: <defaults>
</compile_context>

<pallas_src>
import math
import jax
import jax.numpy as jnp
from jax.experimental import pallas as pl
from jax.experimental.pallas import tpu as pltpu


def _round_up(x: int, m: int) -> int:
    return ((x + m - 1) // m) * m


def _pad_to(arr, shape):
    """Zero-pad `arr` up to `shape` (no-op if already that shape)."""
    pads = [(0, t - s) for s, t in zip(arr.shape, shape)]
    if all(p == (0, 0) for p in pads):
        return arr
    return jnp.pad(arr, pads)


def _pick_tile(dim: int, cap: int, base: int, slack: float = 0.10):
    """Largest tile (multiple of `base`, <= cap) whose padded extent exceeds the
    base-aligned minimum by <`slack`.  Returns (tile, padded_dim)."""
    dim = max(int(dim), 1)
    min_pad = _round_up(dim, base)
    for t in range(cap, base, -base):
        p = _round_up(dim, t)
        if p <= min_pad * (1.0 + slack):
            return t, p
    return base, min_pad


# ------------------------------ kernels ------------------------------------


def _linear_kernel_single(x_ref, w_ref, b_ref, o_ref):
    # Whole problem in one block: x [B,K], w [K,N], b [1,N], o [B,N].
    acc = jnp.dot(x_ref[...], w_ref[...], preferred_element_type=jnp.float32)
    o_ref[...] = (acc + b_ref[...].astype(jnp.float32)).astype(o_ref.dtype)


def _linear_kernel_f32_out(x_ref, w_ref, b_ref, o_ref):
    # f32 output: accumulate directly into the (VMEM-resident) output tile.
    k = pl.program_id(2)

    @pl.when(k == 0)
    def _():
        o_ref[...] = jnp.zeros_like(o_ref)

    o_ref[...] += jnp.dot(x_ref[...], w_ref[...], preferred_element_type=jnp.float32)

    @pl.when(k == pl.num_programs(2) - 1)
    def _():
        o_ref[...] = o_ref[...] + b_ref[...].astype(o_ref.dtype)


def _linear_kernel_acc(x_ref, w_ref, b_ref, o_ref, acc_ref):
    # Non-f32 output: f32 scratch accumulator, cast on the last K step.
    k = pl.program_id(2)

    @pl.when(k == 0)
    def _():
        acc_ref[...] = jnp.zeros_like(acc_ref)

    acc_ref[...] += jnp.dot(x_ref[...], w_ref[...], preferred_element_type=jnp.float32)

    @pl.when(k == pl.num_programs(2) - 1)
    def _():
        o_ref[...] = (acc_ref[...] + b_ref[...].astype(jnp.float32)).astype(o_ref.dtype)


# ------------------------------ wrapper -------------------------------------


def linear_forward(x, weight, bias, *, use_bf16=False, tm=None, tn=None, tk=None):
    """x: [..., in], weight: [out, in] (PyTorch layout), bias: [out] -> [..., out]."""
    orig_shape = x.shape
    K = orig_shape[-1]
    N = weight.shape[0]
    x2d = x.reshape(-1, K) if x.ndim != 2 else x
    B = x2d.shape[0]
    out_dtype = x.dtype

    # One-time wrapper transpose to [in, out]: the kernel contracts (1,)x(0,)
    # so no per-K-step in-kernel transpose can compete with the MXU for the
    # vector-extended issue slots.
    w_t = weight.T                      # [K, N]
    b2d = bias.reshape(1, N)

    in_itemsize = jnp.dtype(x2d.dtype).itemsize
    out_itemsize = jnp.dtype(out_dtype).itemsize
    footprint = (B * K + K * N) * in_itemsize + B * N * out_itemsize

    if use_bf16:
        x2d = x2d.astype(jnp.bfloat16)
        w_t = w_t.astype(jnp.bfloat16)
        in_itemsize = 2

    # ---- Tiny / single-tile fast path: full-dim blocks, no pad, no slice. ----
    if footprint <= (1 << 20) and B <= 512 and K <= 1024 and N <= 1024:
        out = pl.pallas_call(
            _linear_kernel_single,
            out_shape=jax.ShapeDtypeStruct((B, N), out_dtype),
            in_specs=[
                pl.BlockSpec(memory_space=pltpu.MemorySpace.VMEM),
                pl.BlockSpec(memory_space=pltpu.MemorySpace.VMEM),
                pl.BlockSpec(memory_space=pltpu.MemorySpace.VMEM),
            ],
            out_specs=pl.BlockSpec(memory_space=pltpu.MemorySpace.VMEM),
        )(x2d, w_t, b2d)
        return out.reshape(orig_shape[:-1] + (N,))

    # ---- Gridded path: pad only to the 128-lane minimum, divisor-ish tiles. ----
    tn_user = tn
    if tk is None:
        tk, Kp = _pick_tile(K, cap=512, base=128)
    else:
        Kp = _round_up(K, tk)
    if tn is None:
        tn, Np = _pick_tile(N, cap=512, base=128)
    else:
        Np = _round_up(N, tn)
    if tm is None:
        tm, Mp = _pick_tile(B, cap=512, base=8)
    else:
        Mp = _round_up(B, tm)

    # v7x megacore: make sure at least one "parallel" axis has >1 block so the
    # grid can shard across the 2 TensorCores.
    if tn_user is None and (Mp // tm) == 1 and (Np // tn) == 1 and Np >= 256:
        half = Np // 2
        tn = half if half % 128 == 0 else 128
        # Np is a multiple of 128, so tn divides Np in both branches.

    x_p = _pad_to(x2d, (Mp, Kp))          # [Mp, Kp]
    w_p = _pad_to(w_t, (Kp, Np))          # [Kp, Np]
    b_p = _pad_to(b2d, (1, Np))           # [1,  Np]
    grid = (Mp // tm, Np // tn, Kp // tk)

    f32_out = jnp.dtype(out_dtype) == jnp.float32
    if f32_out:
        kernel = _linear_kernel_f32_out
        scratch_shapes = []
        scratch_bytes = 0
    else:
        kernel = _linear_kernel_acc
        scratch_shapes = [pltpu.VMEM((tm, tn), jnp.float32)]
        scratch_bytes = tm * tn * 4

    # VMEM budget: double-buffered inputs + (conservatively) double-buffered
    # output + scratch; keep the requested limit within v7x's 64 MiB physical.
    vmem_needed = (
        2 * (tm * tk + tk * tn + tn) * in_itemsize
        + 2 * tm * tn * out_itemsize
        + scratch_bytes
    )
    vmem_limit = int(min(64 * 2**20, max(2 * vmem_needed + (4 << 20), 32 * 2**20)))

    cost = pl.CostEstimate(
        flops=2 * Mp * Kp * Np,
        transcendentals=0,
        bytes_accessed=(
            Mp * Kp * in_itemsize * (Np // tn)      # x re-streamed per N block
            + Kp * Np * in_itemsize * (Mp // tm)    # W re-streamed per M block
            + Np * jnp.dtype(b_p.dtype).itemsize
            + Mp * Np * out_itemsize
        ),
    )

    out_p = pl.pallas_call(
        kernel,
        out_shape=jax.ShapeDtypeStruct((Mp, Np), out_dtype),
        grid_spec=pltpu.PrefetchScalarGridSpec(
            num_scalar_prefetch=0,
            grid=grid,
            in_specs=[
                pl.BlockSpec((tm, tk), lambda i, j, k: (i, k)),   # x tile
                pl.BlockSpec((tk, tn), lambda i, j, k: (k, j)),   # W^T tile [in, out]
                pl.BlockSpec((1, tn), lambda i, j, k: (0, j)),    # bias tile
            ],
            out_specs=pl.BlockSpec((tm, tn), lambda i, j, k: (i, j)),
            scratch_shapes=scratch_shapes,
        ),
        compiler_params=pltpu.CompilerParams(
            dimension_semantics=("parallel", "parallel", "arbitrary"),
            vmem_limit_bytes=vmem_limit,
        ),
        cost_estimate=cost,
    )(x_p, w_p, b_p)

    out = out_p[:B, :N] if (Mp != B or Np != N) else out_p
    return out.reshape(orig_shape[:-1] + (N,))


def init_linear_params(key, in_features, out_features, dtype=jnp.float32):
    """Matches LinearModel.__init__: xavier_uniform_ weight, bias filled with 0.01."""
    a = math.sqrt(6.0 / (in_features + out_features))
    weight = jax.random.uniform(
        key, (out_features, in_features), minval=-a, maxval=a, dtype=dtype
    )
    bias = jnp.full((out_features,), 0.01, dtype=dtype)
    return weight, bias


if __name__ == "__main__":
    # Small shapes consistent with the CartPole polynomial value-function model.
    batch = 8
    input_size = 32
    output_size = 2

    key = jax.random.PRNGKey(0)
    k_w, k_x = jax.random.split(key)

    weight, bias = init_linear_params(k_w, input_size, output_size)
    x = jax.random.normal(k_x, (batch, input_size), dtype=jnp.float32)

    out = linear_forward(x, weight, bias)          # tiny single-block path
    jax.block_until_ready(out)

    ref = x @ weight.T + bias
    assert out.shape == (batch, output_size)
    assert jnp.allclose(out, ref, atol=1e-5, rtol=1e-5)

    # Larger, non-128-multiple shapes -> gridded path with minimal (128) padding.
    B2, K2, N2 = 256, 384, 320
    kx2, kw2 = jax.random.split(jax.random.PRNGKey(1))
    w2 = jax.random.normal(kw2, (N2, K2), dtype=jnp.float32) * 0.02
    b2 = jnp.full((N2,), 0.01, dtype=jnp.float32)
    x2 = jax.random.normal(kx2, (B2, K2), dtype=jnp.float32)

    out2 = linear_forward(x2, w2, b2)
    jax.block_until_ready(out2)
    ref2 = x2 @ w2.T + b2
    assert jnp.allclose(out2, ref2, atol=1e-4, rtol=1e-4)

    # Optional bf16 operand path (f32 accumulation / f32 output), loose tolerance.
    out3 = linear_forward(x2, w2, b2, use_bf16=True)
    jax.block_until_ready(out3)
    assert out3.dtype == jnp.float32
    assert jnp.allclose(out3, ref2, atol=0.05, rtol=0.05)

    print("KERNEL_OK")
</pallas_src>

<mosaic_0001>
module attributes {stable_mosaic.version = 11 : i64} {
  func.func @_linear_kernel_single(%arg0: memref<8x32xf32, #tpu.memory_space<vmem>>, %arg1: memref<32x2xf32, #tpu.memory_space<vmem>>, %arg2: memref<1x2xf32, #tpu.memory_space<vmem>>, %arg3: memref<8x2xf32, #tpu.memory_space<vmem>>) attributes {dimension_semantics = [], scalar_prefetch = 0 : i64, scratch_operands = 0 : i64, tpu.core_type = #tpu.core_type<tc>} {
    %c0 = arith.constant 0 : index
    %c0_0 = arith.constant 0 : index
    %0 = vector.load %arg0[%c0, %c0_0] : memref<8x32xf32, #tpu.memory_space<vmem>>, vector<8x32xf32>
    %c0_1 = arith.constant 0 : index
    %c0_2 = arith.constant 0 : index
    %1 = vector.load %arg1[%c0_1, %c0_2] : memref<32x2xf32, #tpu.memory_space<vmem>>, vector<32x2xf32>
    %cst = arith.constant dense<0.000000e+00> : vector<8x2xf32>
    %2 = tpu.matmul %0, %1, %cst {dimension_numbers = #tpu.dot_dimension_numbers<[1], [0], [0], [1], [0, 0, 1, 1], [], []>} : vector<8x32xf32>, vector<32x2xf32>, vector<8x2xf32> -> vector<8x2xf32>
    %c0_3 = arith.constant 0 : index
    %c0_4 = arith.constant 0 : index
    %3 = vector.load %arg2[%c0_3, %c0_4] : memref<1x2xf32, #tpu.memory_space<vmem>>, vector<1x2xf32>
    %4 = vector.broadcast %3 : vector<1x2xf32> to vector<8x2xf32>
    %5 = arith.addf %2, %4 : vector<8x2xf32>
    %c0_5 = arith.constant 0 : index
    %c0_6 = arith.constant 0 : index
    %6 = vector.load %arg3[%c0_5, %c0_6] : memref<8x2xf32, #tpu.memory_space<vmem>>, vector<8x2xf32>
    tpu.vector_store %arg3[%c0_5, %c0_6], %5 {strides = array<i32>} : memref<8x2xf32, #tpu.memory_space<vmem>>, vector<8x2xf32>,
    return
  }
}

</mosaic_0001>

<llo_original>
// kernel: tpu_custom_call.1
$region0: #{tpu_custom_call.1}
  #allocation0 [shape = 'u32[]', space=smem, size = 0x4, offset = 0x4, fixed_abs, tag = 'smem constant byte address 0x4 - core index']
  #allocation1 [shape = 'u32[144,128]{1,0:T(1,128)}', space=vmem, size = 0x12000, scoped, tag = 'internal scratch']
  %s0 = inlined_call_operand.vmem [shape: f32[8,32], index: 0, kind: input, shape index: {}]
  %s1 = inlined_call_operand.vmem [shape: f32[32,2], index: 1, kind: input, shape index: {}]
  %s2 = inlined_call_operand.vmem [shape: f32[1,2], index: 2, kind: input, shape index: {}]
  %s3 = inlined_call_operand.vmem [shape: f32[8,2], index: 3, kind: output, shape index: {}]
  %s4 = sld [smem:[#allocation0]]
  $region22: #{tpu_custom_call.1} parent=0
    _
  %s6 = ssub.s32 1, %s4
  %s7 = scalar_select 0, %s6, %s4
  // Predicated region
  $region2: #{tpu_custom_call.1} parent=0 // pred_check
    _
  $region3: #{tpu_custom_call.1} parent=0 // pred_check_branch
    %9 = sbr.rel (0) target = $region5
  $region4: #{tpu_custom_call.1} parent=0 // pred_region
    _
  $region5: #{tpu_custom_call.1} parent=0 // pred_fallthru
    _
  // Predicated region
  $region6: #{tpu_custom_call.1} parent=0 // pred_check
    _
  $region7: #{tpu_custom_call.1} parent=0 // pred_check_branch
    %11 = sbr.rel (0) target = $region9
  $region8: #{tpu_custom_call.1} parent=0 // pred_region
    _
  $region9: #{tpu_custom_call.1} parent=0 // pred_fallthru
    _
  // Predicated region
  $region10: #{tpu_custom_call.1} parent=0 // pred_check
    _
  $region11: #{tpu_custom_call.1} parent=0 // pred_check_branch
    %13 = sbr.rel (0) target = $region13
  $region12: #{tpu_custom_call.1} parent=0 // pred_region
    _
  $region13: #{tpu_custom_call.1} parent=0 // pred_fallthru
    _
  %v14 = vld [vmem:[%s0] sm:$0xff]
  %v15 = vld [vmem:[%s1] sm:$0xff]
  %v16 = vld [vmem:[%s1 + $0x8] sm:$0xff]
  %v17 = vld [vmem:[%s1 + $0x10] sm:$0xff]
  %v18 = vld [vmem:[%s1 + $0x18] sm:$0xff]
  %v19 = vld [vmem:[%s2] sm:$0x1]
  %v21 = vlaneseq
  %v22 = vshrl.u32 %v21, 7
  %v23 = vsub.s32 0, %v22
  %v24 = vrot.slane %v19, %v23
  %vm26 = vcmask 261120
  %v28 = vsel %vm26, %v14, 0
  %30 = vmatprep.subr.mxu0 0.0
  %31 = vmatpush1.msra.mxu0 %v15
  %32 = vmatprep.subr.mxu0 0.0
  %33 = vmatpush1.msra.mxu0 %v16
  %34 = vmatprep.subr.mxu0 0.0
  %35 = vmatpush1.msra.mxu0 %v17
  %36 = vmatprep.subr.mxu0 0.0
  %37 = vmatpush1.msra.mxu0 %v18
  %38 = vmatprep.subr.mxu0 0.0
  %39 = vmatpush1.msra.mxu0 0.0
  %40 = vmatprep.subr.mxu0 0.0
  %41 = vmatpush1.msra.mxu0 0.0
  %42 = vmatprep.subr.mxu0 0.0
  %43 = vmatpush1.msra.mxu0 0.0
  %44 = vmatprep.subr.mxu0 0.0
  %45 = vmatpush1.msra.mxu0 0.0
  %46 = vmatprep.subr.mxu0 0.0
  %47 = vmatpush1.msra.mxu0 0.0
  %48 = vmatprep.subr.mxu0 0.0
  %49 = vmatpush1.msra.mxu0 0.0
  %50 = vmatprep.subr.mxu0 0.0
  %51 = vmatpush1.msra.mxu0 0.0
  %52 = vmatprep.subr.mxu0 0.0
  %53 = vmatpush1.msra.mxu0 0.0
  %54 = vmatprep.subr.mxu0 0.0
  %55 = vmatpush1.msra.mxu0 0.0
  %56 = vmatprep.subr.mxu0 0.0
  %57 = vmatpush1.msra.mxu0 0.0
  %58 = vmatprep.subr.mxu0 0.0
  %59 = vmatpush1.msra.mxu0 0.0
  %60 = vmatprep.subr.mxu0 0.0
  %61 = vmatpush1.msra.mxu0 0.0
  %62 = vmatprep.subr.mxu0 0.0
  %63 = vmatpush1.msra.mxu0 0.0
  %64 = vmatprep.subr.mxu0 0.0
  %65 = vmatpush1.msra.mxu0 0.0
  %66 = vmatprep.subr.mxu0 0.0
  %67 = vmatpush1.msra.mxu0 0.0
  %68 = vmatprep.subr.mxu0 0.0
  %69 = vmatpush1.msra.mxu0 0.0
  %70 = vmatprep.subr.mxu0 0.0
  %71 = vmatpush1.msra.mxu0 0.0
  %72 = vmatprep.subr.mxu0 0.0
  %73 = vmatpush1.msra.mxu0 0.0
  %74 = vmatprep.subr.mxu0 0.0
  %75 = vmatpush1.msra.mxu0 0.0
  %76 = vmatprep.subr.mxu0 0.0
  %77 = vmatpush1.msra.mxu0 0.0
  %78 = vmatprep.subr.mxu0 0.0
  %79 = vmatpush1.msra.mxu0 0.0
  %80 = vmatprep.subr.mxu0 0.0
  %81 = vmatpush1.msra.mxu0 0.0
  %82 = vmatprep.subr.mxu0 0.0
  %83 = vmatpush1.msra.mxu0 0.0
  %84 = vmatprep.subr.mxu0 0.0
  %85 = vmatpush1.msra.mxu0 0.0
  %86 = vmatprep.subr.mxu0 0.0
  %87 = vmatpush1.msra.mxu0 0.0
  %88 = vmatprep.subr.mxu0 0.0
  %89 = vmatpush1.msra.mxu0 0.0
  %90 = vmatprep.subr.mxu0 0.0
  %91 = vmatpush1.msra.mxu0 0.0
  %92 = vmatprep.subr.mxu0 0.0
  %93 = vmatpush1.msra.mxu0 0.0
  %94 = vmatprep.mubr.f32.mxu0 0.0
  %95 = vmatmul.mubr.f32.gmra.mrb[0].mxu0 %v28
  %v96 = vpop.f32.mrb[0].mxu0
  %v97 = vadd.f32 %v24, %v96
  %v98 = vpop.f32.mrb[0].mxu0
  %99 = vdwg.mxu0
  %vm100 = vcmask 15360
  %101 = vst.msk [vmem:[%s3] sm:$0xff] %vm100, %v97
  // Predicated region
  $region14: #{tpu_custom_call.1} parent=0 // pred_check
    _
  $region15: #{tpu_custom_call.1} parent=0 // pred_check_branch
    %103 = sbr.rel (0) target = $region17
  $region16: #{tpu_custom_call.1} parent=0 // pred_region
    _
  $region17: #{tpu_custom_call.1} parent=0 // pred_fallthru
    _
  // Predicated region
  $region18: #{tpu_custom_call.1} parent=0 // pred_check
    _
  $region19: #{tpu_custom_call.1} parent=0 // pred_check_branch
    %105 = sbr.rel (0) target = $region21
  $region20: #{tpu_custom_call.1} parent=0 // pred_region
    _
  $region21: #{tpu_custom_call.1} parent=0 // pred_fallthru
    _

</llo_original>
